<compile_context>
chip_gen: v7x
topology: tpu7x:2x2x1
jax: 0.10.0
libtpu: 0.0.40
codegen_flags: <defaults>
</compile_context>

<pallas_src>
import functools

import jax
import jax.numpy as jnp
from jax.experimental import pallas as pl
from jax.experimental.pallas import tpu as pltpu


def _round_up(x, m):
    return ((x + m - 1) // m) * m


def _choose_tiles(B, C, N, itemsize):
    """Pick (Bt, TN): ~8 MiB streamed per step (both inputs), VMEM-safe tiles."""
    c_pad = _round_up(C, 8)                  # C axis is sublane-padded to 8
    max_tile_bytes = 4 * 1024 * 1024         # per batch-row tile, per input
    target_step_bytes = 8 * 1024 * 1024      # both inputs, per grid step

    if N <= 2048 and c_pad * _round_up(N, 128) * itemsize <= max_tile_bytes:
        tn = N                               # full N block -> no lane masking
    else:
        tn = 2048                            # lane-tile sweet spot (512..2048)
        while tn > 128 and c_pad * tn * itemsize > max_tile_bytes:
            tn //= 2                         # stays a multiple of 128
        if tn >= N:                          # never exceed the array extent
            tn = N
    # TODO(synk): very large C with large N would need a C-tiling pass as
    # well; point-cloud losses have tiny C so it is kept un-tiled here.

    tile_bytes = c_pad * _round_up(tn, 128) * itemsize
    bt = 1
    # check the post-doubling value so the final step stays <= target bytes
    while bt < B and 2 * (bt * 2) * tile_bytes <= target_step_bytes:
        bt *= 2                              # fuse small samples per step
    bt = min(bt, B)
    return bt, tn


def _max_point_loss_kernel(n_points, tn, mask_last_chunk,
                           pred_ref, target_ref, max_out_ref, sum_out_ref,
                           maxv_ref, sumv_ref):
    nb = pl.program_id(1)
    last = pl.num_programs(1) - 1

    @pl.when(nb == 0)
    def _init():
        # squared errors are >= 0, so 0 is a valid identity for the running max
        maxv_ref[...] = jnp.zeros_like(maxv_ref)
        sumv_ref[...] = jnp.zeros_like(sumv_ref)

    p = pred_ref[...].astype(jnp.float32)          # (Bt, C, TN)
    t = target_ref[...].astype(jnp.float32)
    d = p - t
    sq = d * d
    pointwise = jnp.max(sq, axis=1, keepdims=True)  # (Bt, 1, TN): max over C

    if mask_last_chunk:
        # mask columns past N (only the last, partial N-chunk has them);
        # one compare+select on a (Bt,1,TN) vreg slab — negligible VPU cost.
        col = nb * tn + jax.lax.broadcasted_iota(jnp.int32, (1, 1, tn), 2)
        pointwise = jnp.where(col < n_points, pointwise, 0.0)

    maxv_ref[...] = jnp.maximum(maxv_ref[...], pointwise)
    sumv_ref[...] = sumv_ref[...] + pointwise

    @pl.when(nb == last)
    def _finalize():
        # single cross-lane reduce per sample, at the sample boundary
        max_out_ref[...] = jnp.max(maxv_ref[...], axis=-1, keepdims=True)
        sum_out_ref[...] = jnp.sum(sumv_ref[...], axis=-1, keepdims=True)


def max_point_loss(pred, target, batchwise_weight=1.0):
    assert pred.ndim == 3 and pred.shape == target.shape
    B, C, N = pred.shape
    itemsize = max(jnp.dtype(pred.dtype).itemsize, jnp.dtype(target.dtype).itemsize)

    bt, tn = _choose_tiles(B, C, N, itemsize)
    n_chunks = pl.cdiv(N, tn)
    mask_last_chunk = (N % tn) != 0

    # explicit VMEM budget: 2 inputs x 2 pipeline buffers + 2 vector scratches
    c_pad = _round_up(C, 8)
    tn_pad = _round_up(tn, 128)
    in_bytes = 2 * 2 * bt * c_pad * tn_pad * itemsize
    scratch_bytes = 2 * bt * 8 * tn_pad * 4     # (Bt,1,TN) f32, sublane-padded
    vmem_limit = int(min(48 * 2 ** 20,
                         max(16 * 2 ** 20, 2 * (in_bytes + scratch_bytes))))

    kernel = functools.partial(_max_point_loss_kernel, N, tn, mask_last_chunk)

    maxes, sums = pl.pallas_call(
        kernel,
        out_shape=(
            jax.ShapeDtypeStruct((B, 1, 1), jnp.float32),   # per-sample max
            jax.ShapeDtypeStruct((B, 1, 1), jnp.float32),   # per-sample sum
        ),
        grid_spec=pltpu.PrefetchScalarGridSpec(
            num_scalar_prefetch=0,
            grid=(pl.cdiv(B, bt), n_chunks),
            in_specs=[
                pl.BlockSpec((bt, C, tn), lambda bi, nb: (bi, 0, nb)),
                pl.BlockSpec((bt, C, tn), lambda bi, nb: (bi, 0, nb)),
            ],
            out_specs=[
                pl.BlockSpec((bt, 1, 1), lambda bi, nb: (bi, 0, 0)),
                pl.BlockSpec((bt, 1, 1), lambda bi, nb: (bi, 0, 0)),
            ],
            scratch_shapes=[
                pltpu.VMEM((bt, 1, tn), jnp.float32),   # running per-sample max
                pltpu.VMEM((bt, 1, tn), jnp.float32),   # running per-sample sum
            ],
        ),
        compiler_params=pltpu.CompilerParams(
            dimension_semantics=("parallel", "arbitrary"),
            vmem_limit_bytes=vmem_limit,
        ),
    )(pred, target)

    batch_loss = jnp.mean(maxes)                       # mean over B of per-sample max
    point_mean = jnp.sum(sums) / jnp.float32(B * N)    # mean over all B*N points
    return batch_loss * jnp.float32(batchwise_weight) + point_mean


def _reference(pred, target, batchwise_weight=1.0):
    pred = pred.astype(jnp.float32)
    target = target.astype(jnp.float32)
    pointwise = jnp.max((pred - target) ** 2, axis=1)          # (B, N)
    batch_loss = jnp.mean(jnp.max(pointwise, axis=1))
    return batch_loss * batchwise_weight + jnp.mean(pointwise)


if __name__ == "__main__":
    key = jax.random.PRNGKey(0)
    k1, k2 = jax.random.split(key)

    # small shapes consistent with the module: (B, C, N)
    B, C, N = 2, 4, 16
    pred = jax.random.normal(k1, (B, C, N), dtype=jnp.float32)
    target = jax.random.normal(k2, (B, C, N), dtype=jnp.float32)

    out = max_point_loss(pred, target, batchwise_weight=1.0)
    out = jax.block_until_ready(out)
    ref = _reference(pred, target, batchwise_weight=1.0)
    assert jnp.allclose(out, ref, rtol=1e-5, atol=1e-5), (out, ref)

    # extra coverage: odd C/N, partial N-chunk masking, bf16 inputs,
    # multiple / partial batch blocks (scratch re-init path).
    extra_cases = [
        ((7, 3, 1000), jnp.float32, 0.5),    # odd C, non-128-multiple N
        ((3, 4, 4100), jnp.bfloat16, 2.0),   # bf16 stream + masked last chunk
        ((200, 3, 3000), jnp.float32, 1.0),  # multi (+partial) batch blocks
    ]
    for (b, c, n), dt, w in extra_cases:
        ka, kb = jax.random.split(jax.random.PRNGKey(b * 100003 + c * 131 + n))
        p = jax.random.normal(ka, (b, c, n), dtype=jnp.float32).astype(dt)
        t = jax.random.normal(kb, (b, c, n), dtype=jnp.float32).astype(dt)
        o = jax.block_until_ready(max_point_loss(p, t, batchwise_weight=w))
        r = _reference(p, t, batchwise_weight=w)
        assert jnp.allclose(o, r, rtol=1e-4, atol=1e-5), ((b, c, n), dt, o, r)

    print("KERNEL_OK")
</pallas_src>

<mosaic_0001>
module attributes {stable_mosaic.version = 11 : i64} {
  func.func @_max_point_loss_kernel(%arg0: i32, %arg1: i32, %arg2: memref<2x4x16xf32, #tpu.memory_space<vmem>>, %arg3: memref<2x4x16xf32, #tpu.memory_space<vmem>>, %arg4: memref<2x1x1xf32, #tpu.memory_space<vmem>>, %arg5: memref<2x1x1xf32, #tpu.memory_space<vmem>>, %arg6: memref<2x1x16xf32, #tpu.memory_space<vmem>>, %arg7: memref<2x1x16xf32, #tpu.memory_space<vmem>>) attributes {dimension_semantics = [#tpu.dimension_semantics<parallel>, #tpu.dimension_semantics<arbitrary>], iteration_bounds = array<i64: 1, 1>, scalar_prefetch = 0 : i64, scratch_operands = 2 : i64, tpu.core_type = #tpu.core_type<tc>, window_params = [{transform_indices = @transform_0, window_bounds = array<i64: 2, 4, 16>}, {transform_indices = @transform_1, window_bounds = array<i64: 2, 4, 16>}, {transform_indices = @transform_2, window_bounds = array<i64: 2, 1, 1>}, {transform_indices = @transform_3, window_bounds = array<i64: 2, 1, 1>}]} {
    %c0_i32 = arith.constant 0 : i32
    %0 = arith.cmpi eq, %arg1, %c0_i32 : i32
    %1 = arith.extui %0 : i1 to i32
    %c0_i32_0 = arith.constant 0 : i32
    %2 = arith.cmpi ne, %1, %c0_i32_0 : i32
    scf.if %2 {
      %cst_20 = arith.constant 0.000000e+00 : f32
      %18 = vector.broadcast %cst_20 : f32 to vector<2x1x16xf32>
      %c0_21 = arith.constant 0 : index
      %c0_22 = arith.constant 0 : index
      %c0_23 = arith.constant 0 : index
      %19 = vector.load %arg6[%c0_21, %c0_22, %c0_23] : memref<2x1x16xf32, #tpu.memory_space<vmem>>, vector<2x1x16xf32>
      tpu.vector_store %arg6[%c0_21, %c0_22, %c0_23], %18 {strides = array<i32>} : memref<2x1x16xf32, #tpu.memory_space<vmem>>, vector<2x1x16xf32>,
      %cst_24 = arith.constant 0.000000e+00 : f32
      %20 = vector.broadcast %cst_24 : f32 to vector<2x1x16xf32>
      %c0_25 = arith.constant 0 : index
      %c0_26 = arith.constant 0 : index
      %c0_27 = arith.constant 0 : index
      %21 = vector.load %arg7[%c0_25, %c0_26, %c0_27] : memref<2x1x16xf32, #tpu.memory_space<vmem>>, vector<2x1x16xf32>
      tpu.vector_store %arg7[%c0_25, %c0_26, %c0_27], %20 {strides = array<i32>} : memref<2x1x16xf32, #tpu.memory_space<vmem>>, vector<2x1x16xf32>,
    } else {
    }
    %c0 = arith.constant 0 : index
    %c0_1 = arith.constant 0 : index
    %c0_2 = arith.constant 0 : index
    %3 = vector.load %arg2[%c0, %c0_1, %c0_2] : memref<2x4x16xf32, #tpu.memory_space<vmem>>, vector<2x4x16xf32>
    %c0_3 = arith.constant 0 : index
    %c0_4 = arith.constant 0 : index
    %c0_5 = arith.constant 0 : index
    %4 = vector.load %arg3[%c0_3, %c0_4, %c0_5] : memref<2x4x16xf32, #tpu.memory_space<vmem>>, vector<2x4x16xf32>
    %5 = arith.subf %3, %4 : vector<2x4x16xf32>
    %6 = arith.mulf %5, %5 : vector<2x4x16xf32>
    %cst = arith.constant dense<0xFF800000> : vector<2x16xf32>
    %7 = vector.multi_reduction <maximumf>, %6, %cst [1] : vector<2x4x16xf32> to vector<2x16xf32>
    %8 = vector.shape_cast %7 : vector<2x16xf32> to vector<2x1x16xf32>
    %c0_6 = arith.constant 0 : index
    %c0_7 = arith.constant 0 : index
    %c0_8 = arith.constant 0 : index
    %9 = vector.load %arg6[%c0_6, %c0_7, %c0_8] : memref<2x1x16xf32, #tpu.memory_space<vmem>>, vector<2x1x16xf32>
    %10 = arith.maximumf %9, %8 : vector<2x1x16xf32>
    %c0_9 = arith.constant 0 : index
    %c0_10 = arith.constant 0 : index
    %c0_11 = arith.constant 0 : index
    %11 = vector.load %arg6[%c0_9, %c0_10, %c0_11] : memref<2x1x16xf32, #tpu.memory_space<vmem>>, vector<2x1x16xf32>
    tpu.vector_store %arg6[%c0_9, %c0_10, %c0_11], %10 {strides = array<i32>} : memref<2x1x16xf32, #tpu.memory_space<vmem>>, vector<2x1x16xf32>,
    %c0_12 = arith.constant 0 : index
    %c0_13 = arith.constant 0 : index
    %c0_14 = arith.constant 0 : index
    %12 = vector.load %arg7[%c0_12, %c0_13, %c0_14] : memref<2x1x16xf32, #tpu.memory_space<vmem>>, vector<2x1x16xf32>
    %13 = arith.addf %12, %8 : vector<2x1x16xf32>
    %c0_15 = arith.constant 0 : index
    %c0_16 = arith.constant 0 : index
    %c0_17 = arith.constant 0 : index
    %14 = vector.load %arg7[%c0_15, %c0_16, %c0_17] : memref<2x1x16xf32, #tpu.memory_space<vmem>>, vector<2x1x16xf32>
    tpu.vector_store %arg7[%c0_15, %c0_16, %c0_17], %13 {strides = array<i32>} : memref<2x1x16xf32, #tpu.memory_space<vmem>>, vector<2x1x16xf32>,
    %c0_i32_18 = arith.constant 0 : i32
    %15 = arith.cmpi eq, %arg1, %c0_i32_18 : i32
    %16 = arith.extui %15 : i1 to i32
    %c0_i32_19 = arith.constant 0 : i32
    %17 = arith.cmpi ne, %16, %c0_i32_19 : i32
    scf.if %17 {
      %c0_20 = arith.constant 0 : index
      %c0_21 = arith.constant 0 : index
      %c0_22 = arith.constant 0 : index
      %18 = vector.load %arg6[%c0_20, %c0_21, %c0_22] : memref<2x1x16xf32, #tpu.memory_space<vmem>>, vector<2x1x16xf32>
      %cst_23 = arith.constant dense<0xFF800000> : vector<2x1xf32>
      %19 = vector.multi_reduction <maximumf>, %18, %cst_23 [2] : vector<2x1x16xf32> to vector<2x1xf32>
      %20 = vector.shape_cast %19 : vector<2x1xf32> to vector<2x1x1xf32>
      %c0_24 = arith.constant 0 : index
      %c0_25 = arith.constant 0 : index
      %c0_26 = arith.constant 0 : index
      %21 = vector.load %arg4[%c0_24, %c0_25, %c0_26] : memref<2x1x1xf32, #tpu.memory_space<vmem>>, vector<2x1x1xf32>
      tpu.vector_store %arg4[%c0_24, %c0_25, %c0_26], %20 {strides = array<i32>} : memref<2x1x1xf32, #tpu.memory_space<vmem>>, vector<2x1x1xf32>,
      %c0_27 = arith.constant 0 : index
      %c0_28 = arith.constant 0 : index
      %c0_29 = arith.constant 0 : index
      %22 = vector.load %arg7[%c0_27, %c0_28, %c0_29] : memref<2x1x16xf32, #tpu.memory_space<vmem>>, vector<2x1x16xf32>
      %cst_30 = arith.constant dense<0.000000e+00> : vector<2x1xf32>
      %23 = vector.multi_reduction <add>, %22, %cst_30 [2] : vector<2x1x16xf32> to vector<2x1xf32>
      %24 = vector.shape_cast %23 : vector<2x1xf32> to vector<2x1x1xf32>
      %c0_31 = arith.constant 0 : index
      %c0_32 = arith.constant 0 : index
      %c0_33 = arith.constant 0 : index
      %25 = vector.load %arg5[%c0_31, %c0_32, %c0_33] : memref<2x1x1xf32, #tpu.memory_space<vmem>>, vector<2x1x1xf32>
      tpu.vector_store %arg5[%c0_31, %c0_32, %c0_33], %24 {strides = array<i32>} : memref<2x1x1xf32, #tpu.memory_space<vmem>>, vector<2x1x1xf32>,
    } else {
    }
    return
  }
  func.func @transform_0(%arg0: i32, %arg1: i32) -> (i32, i32, i32) {
    %c0_i32 = arith.constant 0 : i32
    %c0_i32_0 = arith.constant 0 : i32
    return %arg0, %c0_i32, %arg1 : i32, i32, i32
  }
  func.func @transform_1(%arg0: i32, %arg1: i32) -> (i32, i32, i32) {
    %c0_i32 = arith.constant 0 : i32
    %c0_i32_0 = arith.constant 0 : i32
    return %arg0, %c0_i32, %arg1 : i32, i32, i32
  }
  func.func @transform_2(%arg0: i32, %arg1: i32) -> (i32, i32, i32) {
    %c0_i32 = arith.constant 0 : i32
    %c0_i32_0 = arith.constant 0 : i32
    %c0_i32_1 = arith.constant 0 : i32
    return %arg0, %c0_i32, %c0_i32_0 : i32, i32, i32
  }
  func.func @transform_3(%arg0: i32, %arg1: i32) -> (i32, i32, i32) {
    %c0_i32 = arith.constant 0 : i32
    %c0_i32_0 = arith.constant 0 : i32
    %c0_i32_1 = arith.constant 0 : i32
    return %arg0, %c0_i32, %c0_i32_0 : i32, i32, i32
  }
}

</mosaic_0001>

<llo_original>
// kernel: tpu_custom_call.1
$region0: #{tpu_custom_call.1}
  #allocation0 [shape = 'u32[]', space=smem, size = 0x4, offset = 0x4, fixed_abs, tag = 'smem constant byte address 0x4 - core index']
  #allocation1 [shape = 'u32[144,128]{1,0:T(1,128)}', space=vmem, size = 0x12000, scoped, tag = 'internal scratch']
  #allocation2 [shape = 'f32[2,1,16]{2,1,0:T(1,128)}', space=vmem, size = 0x400, scoped, tag = 'scratch operand']
  #allocation3 [shape = 'f32[2,1,16]{2,1,0:T(1,128)}', space=vmem, size = 0x400, scoped, tag = 'scratch operand']
  %s0 = inlined_call_operand.hbm [shape: f32[2,4,16], index: 0, kind: input, shape index: {}]
  %s1 = inlined_call_operand.hbm [shape: f32[2,4,16], index: 1, kind: input, shape index: {}]
  %s2 = inlined_call_operand.vmem [shape: f32[2,1,1], index: 2, kind: output, shape index: {0}]
  %s3 = inlined_call_operand.vmem [shape: f32[2,1,1], index: 3, kind: output, shape index: {1}]
  %4 = xla_tuple %s2, %s3
  %s5 = sld [smem:[#allocation0]]
  $region42: #{tpu_custom_call.1} parent=0
    _
  %s7 = ssub.s32 1, %s5
  %s8 = scalar_select 0, %s7, %s5
  $region1: #{tpu_custom_call.1} parent=0
    #allocation4 [shape = 'u8[4096]{0}', space=vmem, size = 0x1000, scoped, tag = 'input window, operand 0, single buffered']
    #allocation5 [shape = 's32[1]{0}', space=sflag, size = 0x4, scoped, tag = 'scoped memory for tpu_custom_call.1']
    #allocation6 [shape = 'u8[4096]{0}', space=vmem, size = 0x1000, scoped, tag = 'input window, operand 1, single buffered']
    #allocation7 [shape = 's32[1]{0}', space=sflag, size = 0x4, scoped, tag = 'scoped memory for tpu_custom_call.1']
    %9 = vsyncpa [#allocation5], 0
    %10 = vsyncpa [#allocation7], 0
    // Predicated region
    $region2: #{tpu_custom_call.1} parent=1 // pred_check
      _
    $region3: #{tpu_custom_call.1} parent=1 // pred_check_branch
      %12 = sbr.rel (0) target = $region5
    $region4: #{tpu_custom_call.1} parent=1 // pred_region
      %s14 = ssub.s32 128, 128
      %15 = vsyncadd [#allocation5], %s14
      %s16 = sshll.u32 [#allocation4], 4
      %s17 = int_to_ptr.vmem [resolvable:$true] %s16
      %22 = dma.hbm_to_vmem [thread:$0]  %s0, 128, %s17, [#allocation5], 64, 64, 4
    $region5: #{tpu_custom_call.1} parent=1 // pred_fallthru
      _
    // Predicated region
    $region6: #{tpu_custom_call.1} parent=1 // pred_check
      _
    $region7: #{tpu_custom_call.1} parent=1 // pred_check_branch
      %24 = sbr.rel (0) target = $region9
    $region8: #{tpu_custom_call.1} parent=1 // pred_region
      %s26 = ssub.s32 128, 128
      %27 = vsyncadd [#allocation7], %s26
      %s28 = sshll.u32 [#allocation6], 4
      %s29 = int_to_ptr.vmem [resolvable:$true] %s28
      %34 = dma.hbm_to_vmem [thread:$0]  %s1, 128, %s29, [#allocation7], 64, 64, 4
    $region9: #{tpu_custom_call.1} parent=1 // pred_fallthru
      _
    // Predicated region
    $region10: #{tpu_custom_call.1} parent=1 // pred_check
      _
    $region11: #{tpu_custom_call.1} parent=1 // pred_check_branch
      %36 = sbr.rel (0) target = $region13
    $region12: #{tpu_custom_call.1} parent=1 // pred_region
      %37 = dma.done [#allocation5], 128
    $region13: #{tpu_custom_call.1} parent=1 // pred_fallthru
      _
    // Predicated region
    $region14: #{tpu_custom_call.1} parent=1 // pred_check
      _
    $region15: #{tpu_custom_call.1} parent=1 // pred_check_branch
      %39 = sbr.rel (0) target = $region17
    $region16: #{tpu_custom_call.1} parent=1 // pred_region
      %40 = dma.done [#allocation7], 128
    $region17: #{tpu_custom_call.1} parent=1 // pred_fallthru
      _
    %p41 = scmp.eq.s32.totalorder 0, 0
    // Predicated region
    $region18: #{tpu_custom_call.1} parent=1 // pred_check
      %p42 = pneg %p41
    $region19: #{tpu_custom_call.1} parent=1 // pred_check_branch
      %44 = sbr.rel (%p42) target = $region21
    $region20: #{tpu_custom_call.1} parent=1 // pred_region
      %vm45 = vcmask 122880
      %46 = vst.msk [vmem:[#allocation2] sm:$0x1] %vm45, 0.0
      %47 = vst.msk [vmem:[#allocation2 + $0x1] sm:$0x1] %vm45, 0.0
      %48 = vst.msk [vmem:[#allocation3] sm:$0x1] %vm45, 0.0
      %49 = vst.msk [vmem:[#allocation3 + $0x1] sm:$0x1] %vm45, 0.0
    $region21: #{tpu_custom_call.1} parent=1 // pred_fallthru
      _
    %v50 = vld [vmem:[#allocation4] sm:$0xf]
    %v51 = vld [vmem:[#allocation4 + $0x4] sm:$0xf]
    %v52 = vld [vmem:[#allocation6] sm:$0xf]
    %v53 = vld [vmem:[#allocation6 + $0x4] sm:$0xf]
    %v54 = vsub.f32 %v50, %v52
    %v55 = vsub.f32 %v51, %v53
    %v56 = vmul.f32 %v54, %v54
    %v57 = vmul.f32 %v55, %v55
    %vm58 = vcmask 125952
    %v59 = vsel %vm58, %v56, -inf
    %v60 = vrot.slane %v59, 4
    %v61 = vmax.f32 %v59, %v60
    %v62 = vrot.slane %v61, 2
    %v63 = vmax.f32 %v61, %v62
    %v64 = vrot.slane %v63, 1
    %v65 = vmax.f32 %v63, %v64
    %v66 = vsel %vm58, %v57, -inf
    %v67 = vrot.slane %v66, 4
    %v68 = vmax.f32 %v66, %v67
    %v69 = vrot.slane %v68, 2
    %v70 = vmax.f32 %v68, %v69
    %v71 = vrot.slane %v70, 1
    %v72 = vmax.f32 %v70, %v71
    %v73 = vld [vmem:[#allocation2] sm:$0x1]
    %v74 = vld [vmem:[#allocation2 + $0x1] sm:$0x1]
    %v75 = vmax.f32 %v73, %v65
    %v76 = vmax.f32 %v74, %v72
    %vm77 = vcmask 122880
    %78 = vst.msk [vmem:[#allocation2] sm:$0x1] %vm77, %v75
    %79 = vst.msk [vmem:[#allocation2 + $0x1] sm:$0x1] %vm77, %v76
    %v80 = vld [vmem:[#allocation3] sm:$0x1]
    %v81 = vld [vmem:[#allocation3 + $0x1] sm:$0x1]
    %v82 = vadd.f32 %v80, %v65
    %v83 = vadd.f32 %v81, %v72
    %84 = vst.msk [vmem:[#allocation3] sm:$0x1] %vm77, %v82
    %85 = vst.msk [vmem:[#allocation3 + $0x1] sm:$0x1] %vm77, %v83
    // Predicated region
    $region22: #{tpu_custom_call.1} parent=1 // pred_check
      %p86 = pneg %p41
    $region23: #{tpu_custom_call.1} parent=1 // pred_check_branch
      %88 = sbr.rel (%p86) target = $region25
    $region24: #{tpu_custom_call.1} parent=1 // pred_region
      %v89 = vld [vmem:[#allocation2] sm:$0x1]
      %v90 = vld [vmem:[#allocation2 + $0x1] sm:$0x1]
      %v91 = vsel %vm77, %v89, -inf
      %92 = vmax.xlane.f32.xlu0 %v91
      %v93 = vpop.xlane.xlu0 %92
      %v94 = vsel %vm77, %v90, -inf
      %95 = vmax.xlane.f32.xlu0 %v94
      %v96 = vpop.xlane.xlu0 %95
      %vm97 = vcmask 0
      %98 = vst.msk [vmem:[%s2] sm:$0x1] %vm97, %v93
      %99 = vst.msk [vmem:[%s2 + $0x1] sm:$0x1] %vm97, %v96
      %v100 = vld [vmem:[#allocation3] sm:$0x1]
      %v101 = vld [vmem:[#allocation3 + $0x1] sm:$0x1]
      %v102 = vsel %vm77, %v100, 0.0
      %103 = vadd.xlane.f32.xlu0 %v102
      %v104 = vpop.xlane.xlu0 %103
      %v105 = vsel %vm77, %v101, 0.0
      %106 = vadd.xlane.f32.xlu0 %v105
      %v107 = vpop.xlane.xlu0 %106
      %108 = vst.msk [vmem:[%s3] sm:$0x1] %vm97, %v104
      %109 = vst.msk [vmem:[%s3 + $0x1] sm:$0x1] %vm97, %v107
    $region25: #{tpu_custom_call.1} parent=1 // pred_fallthru
      _
    // Predicated region
    $region26: #{tpu_custom_call.1} parent=1 // pred_check
      _
    $region27: #{tpu_custom_call.1} parent=1 // pred_check_branch
      %111 = sbr.rel (0) target = $region29
    $region28: #{tpu_custom_call.1} parent=1 // pred_region
      _
    $region29: #{tpu_custom_call.1} parent=1 // pred_fallthru
      _
    // Predicated region
    $region30: #{tpu_custom_call.1} parent=1 // pred_check
      _
    $region31: #{tpu_custom_call.1} parent=1 // pred_check_branch
      %113 = sbr.rel (0) target = $region33
    $region32: #{tpu_custom_call.1} parent=1 // pred_region
      _
    $region33: #{tpu_custom_call.1} parent=1 // pred_fallthru
      _
    // Predicated region
    $region34: #{tpu_custom_call.1} parent=1 // pred_check
      _
    $region35: #{tpu_custom_call.1} parent=1 // pred_check_branch
      %115 = sbr.rel (0) target = $region37
    $region36: #{tpu_custom_call.1} parent=1 // pred_region
      _
    $region37: #{tpu_custom_call.1} parent=1 // pred_fallthru
      _
    // Predicated region
    $region38: #{tpu_custom_call.1} parent=1 // pred_check
      _
    $region39: #{tpu_custom_call.1} parent=1 // pred_check_branch
      %117 = sbr.rel (0) target = $region41
    $region40: #{tpu_custom_call.1} parent=1 // pred_region
      _
    $region41: #{tpu_custom_call.1} parent=1 // pred_fallthru
      _
    %118 = vsyncpa [#allocation5], 1
    %119 = vsyncpa [#allocation7], 1

</llo_original>
